<compile_context>
chip_gen: v7x
topology: tpu7x:2x2x1
jax: 0.10.0
libtpu: 0.0.40
codegen_flags: <defaults>
</compile_context>

<pallas_src>
import functools

import jax
import jax.numpy as jnp
from jax import lax
from jax.experimental import pallas as pl
from jax.experimental.pallas import tpu as pltpu


def _residual_block_kernel(x_ref, w1_ref, w2_ref, o_ref, *,
                           K, pad, NB, L, L1, L2, C_out, start2, LW,
                           use_relu, mxu_dtype, fold_shortcut, same_mode):
    # x_ref : (C_in, NB*L)          lane-packed input slab (sample n -> lanes [n*L,(n+1)*L))
    # w1_ref: (R1, K*C_in + 1)      conv1 rows (+ folded 1x1 shortcut rows); last col = bias
    # w2_ref: (C_out, K*C_out + 1)  last col = bias
    # o_ref : (C_out, LW)           LW = round_up(NB*L2, 128) lane-dense output slab
    f32 = jnp.float32
    xs = x_ref[...]                                    # input dtype (f32)
    xm = xs.astype(mxu_dtype)
    w1 = w1_ref[...]                                   # already mxu_dtype
    w2 = w2_ref[...]

    if same_mode:
        # ---------- 'same' conv fast path: slab-wide pad-once + slice + mask ----------
        LANES = NB * L                                 # == NB*L1 == NB*L2
        jj = lax.broadcasted_iota(jnp.int32, (1, LANES), 1) % L
        ones = jnp.ones((1, LANES), mxu_dtype)

        def im2col(slab):
            # slab: (C, LANES), per-sample segment length L.
            if pad > 0:
                zp = jnp.zeros((slab.shape[0], pad), slab.dtype)
                sp = jnp.concatenate([zp, slab, zp], axis=1)
            else:
                sp = slab
            taps = []
            for t in range(K):
                d = t - pad                            # input offset for this tap
                if d == 0:
                    win = slab
                else:
                    win = sp[:, t:t + LANES]
                    valid = jnp.logical_and(jj + d >= 0, jj + d < L)
                    win = jnp.where(jnp.broadcast_to(valid, win.shape), win,
                                    jnp.zeros_like(win))
                taps.append(win)
            taps.append(ones)                          # bias contraction row
            return jnp.concatenate(taps, axis=0)       # (K*C + 1, LANES)

        # conv1 (+ folded 1x1 shortcut) as one MXU matmul, bias folded in.
        y1 = jnp.dot(w1, im2col(xm), preferred_element_type=f32)      # (R1, LANES)
        act = y1[:C_out]
        # norm1 == nn.Identity() (norm=False)
        if use_relu:
            act = jnp.maximum(act, 0.0)
        if fold_shortcut:
            identity = y1[C_out:]                      # 1x1 shortcut conv (+ bias)
        else:
            identity = xs.astype(f32)                  # exact f32 passthrough (C_in == C_out)

        # conv2 as one MXU matmul; norm2 == nn.Identity()
        y2 = jnp.dot(w2, im2col(act.astype(mxu_dtype)), preferred_element_type=f32)
        res = y2 + identity                            # (C_out, LANES)
        lanes_out = LANES
    else:
        # ---------- general geometry fallback: per-sample pad-once + slice ----------
        ones1 = jnp.ones((1, L1), mxu_dtype)
        ones2 = jnp.ones((1, L2), mxu_dtype)

        def sample_im2col(xn, out_len, ones_row):
            if pad > 0:
                zp = jnp.zeros((xn.shape[0], pad), xn.dtype)
                sp = jnp.concatenate([zp, xn, zp], axis=1)
            else:
                sp = xn
            taps = [sp[:, t:t + out_len] for t in range(K)]
            taps.append(ones_row)
            return jnp.concatenate(taps, axis=0)

        outs = []
        for n in range(NB):
            xn = xm[:, n * L:(n + 1) * L]
            y1 = jnp.dot(w1, sample_im2col(xn, L1, ones1),
                         preferred_element_type=f32)   # (R1, L1)
            act = y1[:C_out]
            if use_relu:
                act = jnp.maximum(act, 0.0)
            if fold_shortcut:
                ident = y1[C_out:, start2:start2 + L2]
            else:
                ident = xs[:, n * L + start2: n * L + start2 + L2].astype(f32)
            y2 = jnp.dot(w2, sample_im2col(act.astype(mxu_dtype), L2, ones2),
                         preferred_element_type=f32)   # (C_out, L2)
            outs.append(y2 + ident)
        res = jnp.concatenate(outs, axis=1)            # (C_out, NB*L2)
        lanes_out = NB * L2

    if LW > lanes_out:                                 # round lane width up -> unmasked store
        res = jnp.concatenate(
            [res, jnp.zeros((C_out, LW - lanes_out), res.dtype)], axis=1)
    o_ref[...] = res.astype(o_ref.dtype)


def residual_block_forward(x, w1, b1, w2, b2, ws, bs, *, kernel_size, padding,
                           use_relu=True, norm=False, mxu_dtype=jnp.float32,
                           batch_block=None):
    """x: (N, C_in, L).  w1: (C_out, C_in, K), w2: (C_out, C_out, K).
    ws/bs: 1x1 shortcut conv params, or None when in_channels == out_channels."""
    # TODO(synk): BatchNorm1d (norm=True) needs cross-batch / running statistics;
    # only the norm=False (Identity) configuration is implemented.
    assert not norm, "BatchNorm1d (norm=True) is not implemented in this kernel"

    N, C_in, L = x.shape
    C_out = w1.shape[0]
    K, p = kernel_size, padding
    L1 = L + 2 * p - K + 1                 # conv1 output length
    L2 = L1 + 2 * p - K + 1                # conv2 / block output length
    assert L1 >= 1 and L2 >= 1
    assert (L - L2) % 2 == 0, "residual crop requires even length difference"
    assert L2 <= L, "residual crop assumes conv output no longer than input"
    start2 = (L - L2) // 2
    same_mode = (L1 == L) and (L2 == L1)   # 'same' conv: 2p == K - 1

    # --- weights: K taps concatenated along the contraction axis, bias as last column ---
    w1cat = jnp.transpose(w1, (0, 2, 1)).reshape(C_out, K * C_in)
    w2cat = jnp.transpose(w2, (0, 2, 1)).reshape(C_out, K * C_out)
    b1c = b1.reshape(C_out, 1)
    b2c = b2.reshape(C_out, 1)
    fold_shortcut = ws is not None
    if fold_shortcut:
        ws2 = ws.reshape(C_out, C_in)
        wsrow = (jnp.zeros((C_out, K * C_in), w1.dtype)
                 .at[:, p * C_in:(p + 1) * C_in].set(ws2))      # 1x1 conv at tap index p
        w1big = jnp.concatenate(
            [jnp.concatenate([w1cat, b1c], axis=1),
             jnp.concatenate([wsrow, bs.reshape(C_out, 1)], axis=1)], axis=0)
    else:
        assert C_in == C_out, "identity shortcut requires in_channels == out_channels"
        w1big = jnp.concatenate([w1cat, b1c], axis=1)
    w2big = jnp.concatenate([w2cat, b2c], axis=1)
    w1big = w1big.astype(mxu_dtype)
    w2big = w2big.astype(mxu_dtype)
    R1 = w1big.shape[0]

    # --- NB: VMEM-budgeted lane packing (target 512-2048 output lanes per grid step) ---
    isz_x = jnp.dtype(x.dtype).itemsize
    isz_m = jnp.dtype(mxu_dtype).itemsize
    bytes_per_lane = (
        4 * isz_x * (C_in + C_out)                      # double-buffered in/out DMA blocks
        + isz_m * ((K + 1) * (C_in + C_out) + 2)        # im2col slabs (+pad, ones rows)
        + 4 * (C_in + 4 * C_out))                       # xs / y1 / act / identity / y2 (f32)
    vmem_budget = 24 << 20                              # headroom under v7x's 64 MiB VMEM
    lane_target = max(128, min(2048, vmem_budget // max(1, bytes_per_lane)))

    if batch_block is None:
        NB = max(1, lane_target // max(L2, 1))
        if not same_mode:
            NB = min(NB, 8)        # fallback path unrolls per sample; bound trace/vregs
    else:
        NB = batch_block
    NB = min(NB, N)
    Ng = pl.cdiv(N, NB)
    Npad = Ng * NB
    if Npad != N:
        x = jnp.pad(x, ((0, Npad - N), (0, 0), (0, 0)))

    # One-time lane-dense relayout: slab[g, c, n*L + j] = x[g*NB + n, c, j].
    xp = (x.reshape(Ng, NB, C_in, L).transpose(0, 2, 1, 3)
           .reshape(Ng, C_in, NB * L))

    LW = ((NB * L2 + 127) // 128) * 128                 # lane width rounded to 128

    kernel = functools.partial(
        _residual_block_kernel, K=K, pad=p, NB=NB, L=L, L1=L1, L2=L2,
        C_out=C_out, start2=start2, LW=LW, use_relu=use_relu,
        mxu_dtype=mxu_dtype, fold_shortcut=fold_shortcut, same_mode=same_mode)

    flops = 2 * Npad * (R1 * (K * C_in + 1) * L1 + C_out * (K * C_out + 1) * L2)
    bytes_accessed = (Npad * C_in * L * isz_x + Ng * C_out * LW * isz_x
                      + (w1big.size + w2big.size) * isz_m)

    out = pl.pallas_call(
        kernel,
        out_shape=jax.ShapeDtypeStruct((Ng, C_out, LW), x.dtype),
        grid_spec=pltpu.PrefetchScalarGridSpec(
            num_scalar_prefetch=0,
            grid=(Ng,),
            in_specs=[
                pl.BlockSpec((None, C_in, NB * L), lambda g: (g, 0, 0)),   # lane-dense x slab
                pl.BlockSpec((R1, K * C_in + 1), lambda g: (0, 0)),        # conv1 (+shortcut, bias)
                pl.BlockSpec((C_out, K * C_out + 1), lambda g: (0, 0)),    # conv2 (+bias)
            ],
            out_specs=pl.BlockSpec((None, C_out, LW), lambda g: (g, 0, 0)),
        ),
        compiler_params=pltpu.CompilerParams(
            dimension_semantics=("parallel",),          # batch chunks are independent
            vmem_limit_bytes=64 * 1024 * 1024),
        cost_estimate=pl.CostEstimate(flops=int(flops), transcendentals=0,
                                      bytes_accessed=int(bytes_accessed)),
    )(xp, w1big, w2big)

    # (Ng, C_out, LW) -> (N, C_out, L2): crop lane padding + restore NCL layout.
    out = out[:, :, :NB * L2].reshape(Ng, C_out, NB, L2)
    out = out.transpose(0, 2, 1, 3).reshape(Npad, C_out, L2)
    return out[:N]


# ----------------------- pure-JAX reference -----------------------
def _ref_forward(x, w1, b1, w2, b2, ws, bs, *, padding, use_relu):
    dn = ('NCH', 'OIH', 'NCH')

    def conv(inp, w, b, p):
        y = lax.conv_general_dilated(inp, w, (1,), [(p, p)], dimension_numbers=dn,
                                     precision=lax.Precision.HIGHEST)
        return y + b[None, :, None]

    identity = conv(x, ws, bs, 0) if ws is not None else x
    out = conv(x, w1, b1, padding)
    if use_relu:
        out = jnp.maximum(out, 0.0)
    out = conv(out, w2, b2, padding)
    L, Lo = identity.shape[2], out.shape[2]
    start = (L - Lo) // 2
    end = L - start
    return out + identity[:, :, start:end]


if __name__ == "__main__":
    key = jax.random.PRNGKey(0)
    scale = 0.1

    # --- config 1: ResidualBlock(4, 8, kernel_size=3, padding=1, norm=False, ReLU)
    N, C_in, C_out, L, K, P = 2, 4, 8, 16, 3, 1
    k1, k2, k3, k4, k5, k6, kx, key = jax.random.split(key, 8)
    w1 = scale * jax.random.normal(k1, (C_out, C_in, K), jnp.float32)
    b1 = scale * jax.random.normal(k2, (C_out,), jnp.float32)
    w2 = scale * jax.random.normal(k3, (C_out, C_out, K), jnp.float32)
    b2 = scale * jax.random.normal(k4, (C_out,), jnp.float32)
    ws = scale * jax.random.normal(k5, (C_out, C_in, 1), jnp.float32)   # 1x1 shortcut conv
    bs = scale * jax.random.normal(k6, (C_out,), jnp.float32)
    x = jax.random.normal(kx, (N, C_in, L), jnp.float32)

    out = residual_block_forward(x, w1, b1, w2, b2, ws, bs,
                                 kernel_size=K, padding=P, use_relu=True)
    out = jax.block_until_ready(out)
    ref = _ref_forward(x, w1, b1, w2, b2, ws, bs, padding=P, use_relu=True)
    assert out.shape == ref.shape, (out.shape, ref.shape)
    assert jnp.allclose(out, ref, rtol=1e-4, atol=1e-4), float(jnp.max(jnp.abs(out - ref)))

    # --- config 2: in_channels == out_channels -> exact identity shortcut path
    C = 8
    k1, k2, k3, k4, kx, key = jax.random.split(key, 6)
    w1b = scale * jax.random.normal(k1, (C, C, K), jnp.float32)
    b1b = scale * jax.random.normal(k2, (C,), jnp.float32)
    w2b = scale * jax.random.normal(k3, (C, C, K), jnp.float32)
    b2b = scale * jax.random.normal(k4, (C,), jnp.float32)
    xb = jax.random.normal(kx, (N, C, L), jnp.float32)

    out2 = residual_block_forward(xb, w1b, b1b, w2b, b2b, None, None,
                                  kernel_size=K, padding=P, use_relu=True)
    out2 = jax.block_until_ready(out2)
    ref2 = _ref_forward(xb, w1b, b1b, w2b, b2b, None, None, padding=P, use_relu=True)
    assert out2.shape == ref2.shape, (out2.shape, ref2.shape)
    assert jnp.allclose(out2, ref2, rtol=1e-4, atol=1e-4), float(jnp.max(jnp.abs(out2 - ref2)))

    # --- config 3: bf16 MXU operands (v6e/v7x fast path), f32 accumulate/residual
    out3 = residual_block_forward(x, w1, b1, w2, b2, ws, bs,
                                  kernel_size=K, padding=P, use_relu=True,
                                  mxu_dtype=jnp.bfloat16)
    out3 = jax.block_until_ready(out3)
    assert out3.shape == ref.shape, (out3.shape, ref.shape)
    assert jnp.allclose(out3, ref, rtol=5e-2, atol=5e-2), float(jnp.max(jnp.abs(out3 - ref)))

    # --- config 4: padding=0 (non-'same' geometry) exercises the fallback path
    out4 = residual_block_forward(x, w1, b1, w2, b2, ws, bs,
                                  kernel_size=K, padding=0, use_relu=True)
    out4 = jax.block_until_ready(out4)
    ref4 = _ref_forward(x, w1, b1, w2, b2, ws, bs, padding=0, use_relu=True)
    assert out4.shape == ref4.shape, (out4.shape, ref4.shape)
    assert jnp.allclose(out4, ref4, rtol=1e-4, atol=1e-4), float(jnp.max(jnp.abs(out4 - ref4)))

    print("KERNEL_OK")
</pallas_src>

<mosaic_0001>
module attributes {stable_mosaic.version = 11 : i64} {
  func.func @_residual_block_kernel(%arg0: i32, %arg1: memref<1x4x32xf32, #tpu.memory_space<vmem>>, %arg2: memref<16x13xf32, #tpu.memory_space<vmem>>, %arg3: memref<8x25xf32, #tpu.memory_space<vmem>>, %arg4: memref<1x8x128xf32, #tpu.memory_space<vmem>>) attributes {dimension_semantics = [#tpu.dimension_semantics<parallel>], iteration_bounds = array<i64: 1>, scalar_prefetch = 0 : i64, scratch_operands = 0 : i64, tpu.core_type = #tpu.core_type<tc>, window_params = [{transform_indices = @transform_0, window_bounds = array<i64: 1, 4, 32>}, {pipeline_mode = #tpu.pipeline_mode<synchronous>, transform_indices = @transform_1, window_bounds = array<i64: 16, 13>}, {pipeline_mode = #tpu.pipeline_mode<synchronous>, transform_indices = @transform_2, window_bounds = array<i64: 8, 25>}, {transform_indices = @transform_3, window_bounds = array<i64: 1, 8, 128>}]} {
    %c0 = arith.constant 0 : index
    %c0_0 = arith.constant 0 : index
    %c0_1 = arith.constant 0 : index
    %0 = vector.load %arg1[%c0, %c0_0, %c0_1] : memref<1x4x32xf32, #tpu.memory_space<vmem>>, vector<1x4x32xf32>
    %1 = vector.shape_cast %0 : vector<1x4x32xf32> to vector<4x32xf32>
    %c0_2 = arith.constant 0 : index
    %c0_3 = arith.constant 0 : index
    %2 = vector.load %arg2[%c0_2, %c0_3] : memref<16x13xf32, #tpu.memory_space<vmem>>, vector<16x13xf32>
    %c0_4 = arith.constant 0 : index
    %c0_5 = arith.constant 0 : index
    %3 = vector.load %arg3[%c0_4, %c0_5] : memref<8x25xf32, #tpu.memory_space<vmem>>, vector<8x25xf32>
    %4 = tpu.iota {dimensions = array<i32: 1>} : vector<1x32xi32>
    %c16_i32 = arith.constant 16 : i32
    %c0_i32 = arith.constant 0 : i32
    %5 = arith.cmpi eq, %c16_i32, %c0_i32 : i32
    %c1_i32 = arith.constant 1 : i32
    %6 = arith.select %5, %c1_i32, %c16_i32 : i32
    %7 = vector.broadcast %6 : i32 to vector<1x32xi32>
    %8 = arith.remsi %4, %7 : vector<1x32xi32>
    %c0_i32_6 = arith.constant 0 : i32
    %9 = vector.broadcast %c0_i32_6 : i32 to vector<1x32xi32>
    %10 = arith.cmpi ne, %8, %9 : vector<1x32xi32>
    %c0_i32_7 = arith.constant 0 : i32
    %11 = vector.broadcast %c0_i32_7 : i32 to vector<1x32xi32>
    %12 = arith.cmpi slt, %8, %11 : vector<1x32xi32>
    %c0_i32_8 = arith.constant 0 : i32
    %13 = arith.cmpi slt, %6, %c0_i32_8 : i32
    %14 = vector.broadcast %13 : i1 to vector<1x32xi1>
    %15 = vector.broadcast %14 : vector<1x32xi1> to vector<1x32xi1>
    %16 = arith.xori %12, %15 : vector<1x32xi1>
    %17 = arith.andi %16, %10 : vector<1x32xi1>
    %18 = vector.broadcast %6 : i32 to vector<1x32xi32>
    %19 = arith.addi %8, %18 : vector<1x32xi32>
    %20 = arith.select %17, %19, %8 : vector<1x32xi1>, vector<1x32xi32>
    %cst = arith.constant 1.000000e+00 : f32
    %21 = vector.broadcast %cst : f32 to vector<1x32xf32>
    %cst_9 = arith.constant 0.000000e+00 : f32
    %22 = vector.broadcast %cst_9 : f32 to vector<4x1xf32>
    %23 = tpu.concatenate %22, %1, %22 in 1 : vector<4x1xf32>, vector<4x32xf32>, vector<4x1xf32> -> vector<4x34xf32>
    %24 = vector.extract_strided_slice %23 {offsets = [0, 0], sizes = [4, 32], strides = [1, 1]} : vector<4x34xf32> to vector<4x32xf32>
    %c-1_i32 = arith.constant -1 : i32
    %25 = vector.broadcast %c-1_i32 : i32 to vector<1x32xi32>
    %26 = arith.addi %20, %25 : vector<1x32xi32>
    %c0_i32_10 = arith.constant 0 : i32
    %27 = vector.broadcast %c0_i32_10 : i32 to vector<1x32xi32>
    %28 = arith.cmpi sge, %26, %27 : vector<1x32xi32>
    %c-1_i32_11 = arith.constant -1 : i32
    %29 = vector.broadcast %c-1_i32_11 : i32 to vector<1x32xi32>
    %30 = arith.addi %20, %29 : vector<1x32xi32>
    %c16_i32_12 = arith.constant 16 : i32
    %31 = vector.broadcast %c16_i32_12 : i32 to vector<1x32xi32>
    %32 = arith.cmpi slt, %30, %31 : vector<1x32xi32>
    %33 = arith.andi %28, %32 : vector<1x32xi1>
    %34 = vector.shape_cast %33 : vector<1x32xi1> to vector<1x32xi1>
    %35 = vector.broadcast %34 : vector<1x32xi1> to vector<4x32xi1>
    %cst_13 = arith.constant 0.000000e+00 : f32
    %36 = vector.broadcast %cst_13 : f32 to vector<4x32xf32>
    %37 = arith.select %35, %24, %36 : vector<4x32xi1>, vector<4x32xf32>
    %38 = vector.extract_strided_slice %23 {offsets = [0, 2], sizes = [4, 32], strides = [1, 1]} : vector<4x34xf32> to vector<4x32xf32>
    %c1_i32_14 = arith.constant 1 : i32
    %39 = vector.broadcast %c1_i32_14 : i32 to vector<1x32xi32>
    %40 = arith.addi %20, %39 : vector<1x32xi32>
    %c0_i32_15 = arith.constant 0 : i32
    %41 = vector.broadcast %c0_i32_15 : i32 to vector<1x32xi32>
    %42 = arith.cmpi sge, %40, %41 : vector<1x32xi32>
    %c1_i32_16 = arith.constant 1 : i32
    %43 = vector.broadcast %c1_i32_16 : i32 to vector<1x32xi32>
    %44 = arith.addi %20, %43 : vector<1x32xi32>
    %c16_i32_17 = arith.constant 16 : i32
    %45 = vector.broadcast %c16_i32_17 : i32 to vector<1x32xi32>
    %46 = arith.cmpi slt, %44, %45 : vector<1x32xi32>
    %47 = arith.andi %42, %46 : vector<1x32xi1>
    %48 = vector.shape_cast %47 : vector<1x32xi1> to vector<1x32xi1>
    %49 = vector.broadcast %48 : vector<1x32xi1> to vector<4x32xi1>
    %cst_18 = arith.constant 0.000000e+00 : f32
    %50 = vector.broadcast %cst_18 : f32 to vector<4x32xf32>
    %51 = arith.select %49, %38, %50 : vector<4x32xi1>, vector<4x32xf32>
    %52 = tpu.concatenate %37, %1, %51, %21 in 0 : vector<4x32xf32>, vector<4x32xf32>, vector<4x32xf32>, vector<1x32xf32> -> vector<13x32xf32>
    %cst_19 = arith.constant dense<0.000000e+00> : vector<16x32xf32>
    %53 = tpu.matmul %2, %52, %cst_19 {dimension_numbers = #tpu.dot_dimension_numbers<[1], [0], [0], [1], [0, 0, 1, 1], [], []>} : vector<16x13xf32>, vector<13x32xf32>, vector<16x32xf32> -> vector<16x32xf32>
    %54 = vector.extract_strided_slice %53 {offsets = [0, 0], sizes = [8, 32], strides = [1, 1]} : vector<16x32xf32> to vector<8x32xf32>
    %cst_20 = arith.constant 0.000000e+00 : f32
    %55 = vector.broadcast %cst_20 : f32 to vector<8x32xf32>
    %56 = arith.maximumf %54, %55 : vector<8x32xf32>
    %57 = vector.extract_strided_slice %53 {offsets = [8, 0], sizes = [8, 32], strides = [1, 1]} : vector<16x32xf32> to vector<8x32xf32>
    %cst_21 = arith.constant 0.000000e+00 : f32
    %58 = vector.broadcast %cst_21 : f32 to vector<8x1xf32>
    %59 = tpu.concatenate %58, %56, %58 in 1 : vector<8x1xf32>, vector<8x32xf32>, vector<8x1xf32> -> vector<8x34xf32>
    %60 = vector.extract_strided_slice %59 {offsets = [0, 0], sizes = [8, 32], strides = [1, 1]} : vector<8x34xf32> to vector<8x32xf32>
    %c-1_i32_22 = arith.constant -1 : i32
    %61 = vector.broadcast %c-1_i32_22 : i32 to vector<1x32xi32>
    %62 = arith.addi %20, %61 : vector<1x32xi32>
    %c0_i32_23 = arith.constant 0 : i32
    %63 = vector.broadcast %c0_i32_23 : i32 to vector<1x32xi32>
    %64 = arith.cmpi sge, %62, %63 : vector<1x32xi32>
    %c-1_i32_24 = arith.constant -1 : i32
    %65 = vector.broadcast %c-1_i32_24 : i32 to vector<1x32xi32>
    %66 = arith.addi %20, %65 : vector<1x32xi32>
    %c16_i32_25 = arith.constant 16 : i32
    %67 = vector.broadcast %c16_i32_25 : i32 to vector<1x32xi32>
    %68 = arith.cmpi slt, %66, %67 : vector<1x32xi32>
    %69 = arith.andi %64, %68 : vector<1x32xi1>
    %70 = vector.shape_cast %69 : vector<1x32xi1> to vector<1x32xi1>
    %71 = vector.broadcast %70 : vector<1x32xi1> to vector<8x32xi1>
    %cst_26 = arith.constant 0.000000e+00 : f32
    %72 = vector.broadcast %cst_26 : f32 to vector<8x32xf32>
    %73 = arith.select %71, %60, %72 : vector<8x32xi1>, vector<8x32xf32>
    %74 = vector.extract_strided_slice %59 {offsets = [0, 2], sizes = [8, 32], strides = [1, 1]} : vector<8x34xf32> to vector<8x32xf32>
    %c1_i32_27 = arith.constant 1 : i32
    %75 = vector.broadcast %c1_i32_27 : i32 to vector<1x32xi32>
    %76 = arith.addi %20, %75 : vector<1x32xi32>
    %c0_i32_28 = arith.constant 0 : i32
    %77 = vector.broadcast %c0_i32_28 : i32 to vector<1x32xi32>
    %78 = arith.cmpi sge, %76, %77 : vector<1x32xi32>
    %c1_i32_29 = arith.constant 1 : i32
    %79 = vector.broadcast %c1_i32_29 : i32 to vector<1x32xi32>
    %80 = arith.addi %20, %79 : vector<1x32xi32>
    %c16_i32_30 = arith.constant 16 : i32
    %81 = vector.broadcast %c16_i32_30 : i32 to vector<1x32xi32>
    %82 = arith.cmpi slt, %80, %81 : vector<1x32xi32>
    %83 = arith.andi %78, %82 : vector<1x32xi1>
    %84 = vector.shape_cast %83 : vector<1x32xi1> to vector<1x32xi1>
    %85 = vector.broadcast %84 : vector<1x32xi1> to vector<8x32xi1>
    %cst_31 = arith.constant 0.000000e+00 : f32
    %86 = vector.broadcast %cst_31 : f32 to vector<8x32xf32>
    %87 = arith.select %85, %74, %86 : vector<8x32xi1>, vector<8x32xf32>
    %88 = tpu.concatenate %73, %56, %87, %21 in 0 : vector<8x32xf32>, vector<8x32xf32>, vector<8x32xf32>, vector<1x32xf32> -> vector<25x32xf32>
    %cst_32 = arith.constant dense<0.000000e+00> : vector<8x32xf32>
    %89 = tpu.matmul %3, %88, %cst_32 {dimension_numbers = #tpu.dot_dimension_numbers<[1], [0], [0], [1], [0, 0, 1, 1], [], []>} : vector<8x25xf32>, vector<25x32xf32>, vector<8x32xf32> -> vector<8x32xf32>
    %90 = arith.addf %89, %57 : vector<8x32xf32>
    %cst_33 = arith.constant 0.000000e+00 : f32
    %91 = vector.broadcast %cst_33 : f32 to vector<8x96xf32>
    %92 = tpu.concatenate %90, %91 in 1 : vector<8x32xf32>, vector<8x96xf32> -> vector<8x128xf32>
    %c0_34 = arith.constant 0 : index
    %c0_35 = arith.constant 0 : index
    %c0_36 = arith.constant 0 : index
    %93 = vector.load %arg4[%c0_34, %c0_35, %c0_36] : memref<1x8x128xf32, #tpu.memory_space<vmem>>, vector<1x8x128xf32>
    %94 = vector.shape_cast %93 : vector<1x8x128xf32> to vector<8x128xf32>
    %95 = vector.shape_cast %92 : vector<8x128xf32> to vector<1x8x128xf32>
    tpu.vector_store %arg4[%c0_34, %c0_35, %c0_36], %95 {strides = array<i32>} : memref<1x8x128xf32, #tpu.memory_space<vmem>>, vector<1x8x128xf32>,
    return
  }
  func.func @transform_0(%arg0: i32) -> (i32, i32, i32) {
    %c0_i32 = arith.constant 0 : i32
    %c0_i32_0 = arith.constant 0 : i32
    %c0_i32_1 = arith.constant 0 : i32
    return %arg0, %c0_i32, %c0_i32_0 : i32, i32, i32
  }
  func.func @transform_1(%arg0: i32) -> (i32, i32) {
    %c0_i32 = arith.constant 0 : i32
    %c0_i32_0 = arith.constant 0 : i32
    %c0_i32_1 = arith.constant 0 : i32
    return %c0_i32, %c0_i32_0 : i32, i32
  }
  func.func @transform_2(%arg0: i32) -> (i32, i32) {
    %c0_i32 = arith.constant 0 : i32
    %c0_i32_0 = arith.constant 0 : i32
    %c0_i32_1 = arith.constant 0 : i32
    return %c0_i32, %c0_i32_0 : i32, i32
  }
  func.func @transform_3(%arg0: i32) -> (i32, i32, i32) {
    %c0_i32 = arith.constant 0 : i32
    %c0_i32_0 = arith.constant 0 : i32
    %c0_i32_1 = arith.constant 0 : i32
    return %arg0, %c0_i32, %c0_i32_0 : i32, i32, i32
  }
}

</mosaic_0001>

<llo_original>
// kernel: tpu_custom_call.1
$region0: #{tpu_custom_call.1}
  #allocation0 [shape = 'u32[]', space=smem, size = 0x4, offset = 0x4, fixed_abs, tag = 'smem constant byte address 0x4 - core index']
  #allocation1 [shape = 'u32[144,128]{1,0:T(1,128)}', space=vmem, size = 0x12000, scoped, tag = 'internal scratch']
  %s0 = inlined_call_operand.hbm [shape: f32[1,4,32], index: 0, kind: input, shape index: {}]
  %s1 = inlined_call_operand.hbm [shape: f32[16,13], index: 1, kind: input, shape index: {}]
  %s2 = inlined_call_operand.hbm [shape: f32[8,25], index: 2, kind: input, shape index: {}]
  %s3 = inlined_call_operand.hbm [shape: f32[1,8,128], index: 3, kind: output, shape index: {}]
  %s4 = sld [smem:[#allocation0]]
  $region34: #{tpu_custom_call.1} parent=0
    _
  %s6 = ssub.s32 1, %s4
  %s7 = scalar_select 0, %s6, %s4
  $region1: #{tpu_custom_call.1} parent=0
    #allocation2 [shape = 'u8[2048]{0}', space=vmem, size = 0x800, scoped, tag = 'input window, operand 0, single buffered']
    #allocation3 [shape = 's32[1]{0}', space=sflag, size = 0x4, scoped, tag = 'scoped memory for tpu_custom_call.1']
    #allocation4 [shape = 's32[1]{0}', space=sflag, size = 0x4, scoped, tag = 'scoped memory for tpu_custom_call.1']
    #allocation5 [shape = 'u8[8192]{0}', space=vmem, size = 0x2000, scoped, tag = 'input window, operand 1, single buffered']
    #allocation6 [shape = 's32[1]{0}', space=sflag, size = 0x4, scoped, tag = 'scoped memory for tpu_custom_call.1']
    #allocation7 [shape = 'u8[4096]{0}', space=vmem, size = 0x1000, scoped, tag = 'input window, operand 2, single buffered']
    #allocation8 [shape = 'u8[4096]{0}', space=vmem, size = 0x1000, scoped, tag = 'output window, operand 0, single buffered']
    %8 = vsyncpa [#allocation3], 0
    %9 = vsyncpa [#allocation6], 0
    %10 = vsyncpa [#allocation4], 0
    // Predicated region
    $region2: #{tpu_custom_call.1} parent=1 // pred_check
      _
    $region3: #{tpu_custom_call.1} parent=1 // pred_check_branch
      %12 = sbr.rel (0) target = $region5
    $region4: #{tpu_custom_call.1} parent=1 // pred_region
      %s14 = ssub.s32 64, 64
      %15 = vsyncadd [#allocation3], %s14
      %s17 = sshll.u32 [#allocation2], 4
      %s18 = int_to_ptr.vmem [resolvable:$true] %s17
      %20 = dma.hbm_to_vmem [thread:$0]  %s0, 64, %s18, [#allocation3]
    $region5: #{tpu_custom_call.1} parent=1 // pred_fallthru
      _
    // Predicated region
    $region6: #{tpu_custom_call.1} parent=1 // pred_check
      _
    $region7: #{tpu_custom_call.1} parent=1 // pred_check_branch
      %22 = sbr.rel (0) target = $region9
    $region8: #{tpu_custom_call.1} parent=1 // pred_region
      %s24 = ssub.s32 256, 256
      %25 = vsyncadd [#allocation6], %s24
      %s26 = sshll.u32 [#allocation5], 4
      %s27 = int_to_ptr.vmem [resolvable:$true] %s26
      %32 = dma.hbm_to_vmem [thread:$0]  %s1, 256, %s27, [#allocation6], 128, 128, 8
    $region9: #{tpu_custom_call.1} parent=1 // pred_fallthru
      _
    // Predicated region
    $region10: #{tpu_custom_call.1} parent=1 // pred_check
      _
    $region11: #{tpu_custom_call.1} parent=1 // pred_check_branch
      %34 = sbr.rel (0) target = $region13
    $region12: #{tpu_custom_call.1} parent=1 // pred_region
      %s36 = ssub.s32 128, 128
      %37 = vsyncadd [#allocation6], %s36
      %s39 = sshll.u32 [#allocation7], 4
      %s40 = int_to_ptr.vmem [resolvable:$true] %s39
      %42 = dma.hbm_to_vmem [thread:$0]  %s2, 128, %s40, [#allocation6]
    $region13: #{tpu_custom_call.1} parent=1 // pred_fallthru
      _
    // Predicated region
    $region14: #{tpu_custom_call.1} parent=1 // pred_check
      _
    $region15: #{tpu_custom_call.1} parent=1 // pred_check_branch
      %44 = sbr.rel (0) target = $region17
    $region16: #{tpu_custom_call.1} parent=1 // pred_region
      %45 = dma.done [#allocation3], 64
    $region17: #{tpu_custom_call.1} parent=1 // pred_fallthru
      _
    // Predicated region
    $region18: #{tpu_custom_call.1} parent=1 // pred_check
      _
    $region19: #{tpu_custom_call.1} parent=1 // pred_check_branch
      %47 = sbr.rel (0) target = $region21
    $region20: #{tpu_custom_call.1} parent=1 // pred_region
      %48 = dma.done [#allocation6], 256
    $region21: #{tpu_custom_call.1} parent=1 // pred_fallthru
      _
    // Predicated region
    $region22: #{tpu_custom_call.1} parent=1 // pred_check
      _
    $region23: #{tpu_custom_call.1} parent=1 // pred_check_branch
      %50 = sbr.rel (0) target = $region25
    $region24: #{tpu_custom_call.1} parent=1 // pred_region
      %51 = dma.done [#allocation6], 128
    $region25: #{tpu_custom_call.1} parent=1 // pred_fallthru
      _
    %v52 = vld [vmem:[#allocation2] sm:$0xf]
    %v53 = vld [vmem:[#allocation5] sm:$0xff]
    %v54 = vld [vmem:[#allocation5 + $0x8] sm:$0xff]
    %v55 = vld [vmem:[#allocation7] sm:$0xff]
    %v56 = vlaneseq
    %v57 = vand.u32 %v56, 127
    %vm58 = vcmp.lt.s32.totalorder %v57, 0
    %v59 = vsub.s32 0, %v57
    %v60 = vsel %vm58, %v59, %v57
    %v61 = vshrl.u32 %v60, 4
    %v62 = vand.u32 %v60, 15
    %v63 = vsub.s32 0, %v62
    %v64 = vsel %vm58, %v63, %v62
    %vm65 = vcmp.ne.s32.totalorder %v64, 0
    %vm66 = vcmp.lt.s32.totalorder %v64, 0
    %vm67 = vmand %vm66, %vm65
    %v68 = vadd.s32 %v64, 16
    %v69 = vsel %vm67, %v68, %v64
    %71 = vrot.lane.b32.xlu0 %v52, 1
    %v72 = vpop.permute.xlu0 %71
    %vm74 = vcmask 7168
    %v75 = vsel %vm74, 0.0, %v72
    %vm76 = vcmask 269312
    %v77 = vsel %vm76, %v75, 0.0
    %v78 = vadd.s32 %v69, 4294967295
    %vm79 = vcmp.ge.s32.totalorder %v78, 0
    %vm80 = vcmp.lt.s32.totalorder %v78, 16
    %vm81 = vmand %vm79, %vm80
    %v82 = vsel %vm81, 1, 0
    %vm83 = vcmp.eq.s32.totalorder %v82, 1
    %v84 = vsel %vm83, %v77, 0.0
    %v85 = vadd.s32 %v69, 1
    %vm86 = vcmp.ge.s32.totalorder %v85, 0
    %vm87 = vcmp.lt.s32.totalorder %v85, 16
    %vm88 = vmand %vm86, %vm87
    %v89 = vsel %vm88, 1, 0
    %vm90 = vcmp.eq.s32.totalorder %v89, 1
    %92 = vrot.lane.b32.xlu0 %v77, 126
    %v93 = vpop.permute.xlu0 %92
    %v95 = vsel %vm90, %v93, 0.0
    %v96 = vrot.slane %v52, 4
    %vm98 = vcmask 1043456
    %v99 = vsel %vm98, %v84, %v96
    %v100 = vsel %vm98, %v95, 1.0
    %vm101 = vcmask 105472
    %v103 = vsel %vm101, %v53, 0
    %v106 = vsel %vm101, %v54, 0
    %vm108 = vcmask 1044480
    %v110 = vsel %vm108, %v100, 0
    %112 = vmatprep.subr.mxu0 0.0
    %113 = vmatpush1.msra.mxu0 %v99
    %114 = vmatprep.subr.mxu0 0.0
    %115 = vmatpush1.msra.mxu0 %v110
    %116 = vmatprep.subr.mxu0 0.0
    %117 = vmatpush1.msra.mxu0 0.0
    %118 = vmatprep.subr.mxu0 0.0
    %119 = vmatpush1.msra.mxu0 0.0
    %120 = vmatprep.subr.mxu0 0.0
    %121 = vmatpush1.msra.mxu0 0.0
    %122 = vmatprep.subr.mxu0 0.0
    %123 = vmatpush1.msra.mxu0 0.0
    %124 = vmatprep.subr.mxu0 0.0
    %125 = vmatpush1.msra.mxu0 0.0
    %126 = vmatprep.subr.mxu0 0.0
    %127 = vmatpush1.msra.mxu0 0.0
    %128 = vmatprep.subr.mxu0 0.0
    %129 = vmatpush1.msra.mxu0 0.0
    %130 = vmatprep.subr.mxu0 0.0
    %131 = vmatpush1.msra.mxu0 0.0
    %132 = vmatprep.subr.mxu0 0.0
    %133 = vmatpush1.msra.mxu0 0.0
    %134 = vmatprep.subr.mxu0 0.0
    %135 = vmatpush1.msra.mxu0 0.0
    %136 = vmatprep.subr.mxu0 0.0
    %137 = vmatpush1.msra.mxu0 0.0
    %138 = vmatprep.subr.mxu0 0.0
    %139 = vmatpush1.msra.mxu0 0.0
    %140 = vmatprep.subr.mxu0 0.0
    %141 = vmatpush1.msra.mxu0 0.0
    %142 = vmatprep.subr.mxu0 0.0
    %143 = vmatpush1.msra.mxu0 0.0
    %144 = vmatprep.subr.mxu0 0.0
    %145 = vmatpush1.msra.mxu0 0.0
    %146 = vmatprep.subr.mxu0 0.0
    %147 = vmatpush1.msra.mxu0 0.0
    %148 = vmatprep.subr.mxu0 0.0
    %149 = vmatpush1.msra.mxu0 0.0
    %150 = vmatprep.subr.mxu0 0.0
    %151 = vmatpush1.msra.mxu0 0.0
    %152 = vmatprep.subr.mxu0 0.0
    %153 = vmatpush1.msra.mxu0 0.0
    %154 = vmatprep.subr.mxu0 0.0
    %155 = vmatpush1.msra.mxu0 0.0
    %156 = vmatprep.subr.mxu0 0.0
    %157 = vmatpush1.msra.mxu0 0.0
    %158 = vmatprep.subr.mxu0 0.0
    %159 = vmatpush1.msra.mxu0 0.0
    %160 = vmatprep.subr.mxu0 0.0
    %161 = vmatpush1.msra.mxu0 0.0
    %162 = vmatprep.subr.mxu0 0.0
    %163 = vmatpush1.msra.mxu0 0.0
    %164 = vmatprep.subr.mxu0 0.0
    %165 = vmatpush1.msra.mxu0 0.0
    %166 = vmatprep.subr.mxu0 0.0
    %167 = vmatpush1.msra.mxu0 0.0
    %168 = vmatprep.subr.mxu0 0.0
    %169 = vmatpush1.msra.mxu0 0.0
    %170 = vmatprep.subr.mxu0 0.0
    %171 = vmatpush1.msra.mxu0 0.0
    %172 = vmatprep.subr.mxu0 0.0
    %173 = vmatpush1.msra.mxu0 0.0
    %174 = vmatprep.subr.mxu0 0.0
    %175 = vmatpush1.msra.mxu0 0.0
    %176 = vmatprep.mubr.f32.mxu0 0.0
    %177 = vmatmul.mubr.f32.gmra.mrb[0].mxu0 %v103
    %v178 = vpop.f32.mrb[0].mxu0
    %v179 = vadd.f32 0.0, %v178
    %v180 = vpop.f32.mrb[0].mxu0
    %181 = vmatprep.mubr.f32.mxu0 0.0
    %182 = vmatmul.mubr.f32.gmra.mrb[0].mxu0 %v106
    %v183 = vpop.f32.mrb[0].mxu0
    %v184 = vadd.f32 0.0, %v183
    %v185 = vpop.f32.mrb[0].mxu0
    %186 = vdwg.mxu0
    %v187 = vmax.f32 %v179, 0.0
    %189 = vrot.lane.b32.xlu0 %v187, 1
    %v190 = vpop.permute.xlu0 %189
    %v192 = vsel %vm74, 0.0, %v190
    %v193 = vsel %vm76, %v192, 0.0
    %v194 = vsel %vm83, %v193, 0.0
    %196 = vrot.lane.b32.xlu0 %v193, 126
    %v197 = vpop.permute.xlu0 %196
    %v199 = vsel %vm90, %v197, 0.0
    %vm200 = vcmask 203776
    %v202 = vsel %vm200, %v55, 0
    %vm204 = vcmask 1040384
    %v206 = vsel %vm204, 1.0, 0
    %208 = vmatprep.subr.mxu0 0.0
    %209 = vmatpush1.msra.mxu0 %v194
    %210 = vmatprep.subr.mxu0 0.0
    %211 = vmatpush1.msra.mxu0 %v187
    %212 = vmatprep.subr.mxu0 0.0
    %213 = vmatpush1.msra.mxu0 %v199
    %214 = vmatprep.subr.mxu0 0.0
    %215 = vmatpush1.msra.mxu0 %v206
    %216 = vmatprep.subr.mxu0 0.0
    %217 = vmatpush1.msra.mxu0 0.0
    %218 = vmatprep.subr.mxu0 0.0
    %219 = vmatpush1.msra.mxu0 0.0
    %220 = vmatprep.subr.mxu0 0.0
    %221 = vmatpush1.msra.mxu0 0.0
    %222 = vmatprep.subr.mxu0 0.0
    %223 = vmatpush1.msra.mxu0 0.0
    %224 = vmatprep.subr.mxu0 0.0
    %225 = vmatpush1.msra.mxu0 0.0
    %226 = vmatprep.subr.mxu0 0.0
    %227 = vmatpush1.msra.mxu0 0.0
    %228 = vmatprep.subr.mxu0 0.0
    %229 = vmatpush1.msra.mxu0 0.0
    %230 = vmatprep.subr.mxu0 0.0
    %231 = vmatpush1.msra.mxu0 0.0
    %232 = vmatprep.subr.mxu0 0.0
    %233 = vmatpush1.msra.mxu0 0.0
    %234 = vmatprep.subr.mxu0 0.0
    %235 = vmatpush1.msra.mxu0 0.0
    %236 = vmatprep.subr.mxu0 0.0
    %237 = vmatpush1.msra.mxu0 0.0
    %238 = vmatprep.subr.mxu0 0.0
    %239 = vmatpush1.msra.mxu0 0.0
    %240 = vmatprep.subr.mxu0 0.0
    %241 = vmatpush1.msra.mxu0 0.0
    %242 = vmatprep.subr.mxu0 0.0
    %243 = vmatpush1.msra.mxu0 0.0
    %244 = vmatprep.subr.mxu0 0.0
    %245 = vmatpush1.msra.mxu0 0.0
    %246 = vmatprep.subr.mxu0 0.0
    %247 = vmatpush1.msra.mxu0 0.0
    %248 = vmatprep.subr.mxu0 0.0
    %249 = vmatpush1.msra.mxu0 0.0
    %250 = vmatprep.subr.mxu0 0.0
    %251 = vmatpush1.msra.mxu0 0.0
    %252 = vmatprep.subr.mxu0 0.0
    %253 = vmatpush1.msra.mxu0 0.0
    %254 = vmatprep.subr.mxu0 0.0
    %255 = vmatpush1.msra.mxu0 0.0
    %256 = vmatprep.subr.mxu0 0.0
    %257 = vmatpush1.msra.mxu0 0.0
    %258 = vmatprep.subr.mxu0 0.0
    %259 = vmatpush1.msra.mxu0 0.0
    %260 = vmatprep.subr.mxu0 0.0
    %261 = vmatpush1.msra.mxu0 0.0
    %262 = vmatprep.subr.mxu0 0.0
    %263 = vmatpush1.msra.mxu0 0.0
    %264 = vmatprep.subr.mxu0 0.0
    %265 = vmatpush1.msra.mxu0 0.0
    %266 = vmatprep.subr.mxu0 0.0
    %267 = vmatpush1.msra.mxu0 0.0
    %268 = vmatprep.subr.mxu0 0.0
    %269 = vmatpush1.msra.mxu0 0.0
    %270 = vmatprep.subr.mxu0 0.0
    %271 = vmatpush1.msra.mxu0 0.0
    %272 = vmatprep.mubr.f32.mxu0 0.0
    %273 = vmatmul.mubr.f32.gmra.mrb[0].mxu0 %v202
    %v274 = vpop.f32.mrb[0].mxu0
    %v275 = vadd.f32 %v184, %v274
    %v276 = vpop.f32.mrb[0].mxu0
    %277 = vdwg.mxu0
    %vm278 = vcmask 261120
    %v279 = vsel %vm278, %v275, 0.0
    %280 = vst [vmem:[#allocation8] sm:$0xff] %v279
    // Predicated region
    $region26: #{tpu_custom_call.1} parent=1 // pred_check
      _
    $region27: #{tpu_custom_call.1} parent=1 // pred_check_branch
      %282 = sbr.rel (0) target = $region29
    $region28: #{tpu_custom_call.1} parent=1 // pred_region
      %s284 = ssub.s32 128, 128
      %285 = vsyncadd [#allocation4], %s284
      %s287 = sshll.u32 [#allocation8], 4
      %s288 = int_to_ptr.vmem [resolvable:$true] %s287
      %290 = dma.vmem_to_hbm [thread:$0]  %s288, 128, %s3, [#allocation4]
    $region29: #{tpu_custom_call.1} parent=1 // pred_fallthru
      _
    // Predicated region
    $region30: #{tpu_custom_call.1} parent=1 // pred_check
      _
    $region31: #{tpu_custom_call.1} parent=1 // pred_check_branch
      %292 = sbr.rel (0) target = $region33
    $region32: #{tpu_custom_call.1} parent=1 // pred_region
      %293 = dma.done [#allocation4], 128
    $region33: #{tpu_custom_call.1} parent=1 // pred_fallthru
      _
    %294 = vsyncpa [#allocation3], 1
    %295 = vsyncpa [#allocation6], 1
    %296 = vsyncpa [#allocation4], 1

</llo_original>
